<compile_context>
chip_gen: v7x
topology: tpu7x:2x2x1
jax: 0.10.0
libtpu: 0.0.40
codegen_flags: <defaults>
</compile_context>

<pallas_src>
import jax
import jax.numpy as jnp
from jax.experimental import pallas as pl
from jax.experimental.pallas import tpu as pltpu


def _round_up(x, m):
    return (x + m - 1) // m * m


def _dual_attn_kernel(xc_ref, xs_ref, w1c_ref, w1s_ref, b1c_ref, b1s_ref,
                      w2c_ref, w2s_ref, b2c_ref, b2s_ref, out_ref):
    # xc_ref/xs_ref: [TN, D]  natural-layout feature tiles (rows = batch)
    # w1*_ref:       [H, D]   Linear1 weight, [out, in]
    # b1*_ref:       [H, 1]
    # w2*_ref:       [1, H]   Linear2 weight, [out, in]
    # b2*_ref:       [1, 1]
    # out_ref:       [2, TN]  row 0 = content attention weight, row 1 = social

    def branch_logit(x_ref, w1, b1, w2, b2):
        # Contract the feature dim of BOTH operands (q @ k^T pattern) so the
        # hidden activations come out feature-major / lane-dense: [H, TN].
        h = jax.lax.dot_general(
            w1, x_ref[...],
            dimension_numbers=(((1,), (1,)), ((), ())),
            preferred_element_type=jnp.float32)          # [H, TN] (f32 acc)
        h = jnp.maximum(h + b1, 0.0)                     # bias + ReLU, lane-dense
        return jnp.dot(w2, h, preferred_element_type=jnp.float32) + b2  # [1, TN]

    def sigmoid(x):                                      # EUP-friendly tanh form
        return 0.5 * jnp.tanh(0.5 * x) + 0.5

    lc = branch_logit(xc_ref, w1c_ref[...], b1c_ref[...], w2c_ref[...], b2c_ref[...])
    ls = branch_logit(xs_ref, w1s_ref[...], b1s_ref[...], w2s_ref[...], b2s_ref[...])

    # softmax([sigmoid(lc), sigmoid(ls)]) == [sigmoid(sc - ss), 1 - sigmoid(sc - ss)]
    p_content = sigmoid(sigmoid(lc) - sigmoid(ls))       # [1, TN]
    out_ref[0:1, :] = p_content
    out_ref[1:2, :] = 1.0 - p_content


def _pick_tile(n, d, itemsize, tn_req):
    """Row tile: multiple of 128 (lane-dense output stores), VMEM-budgeted."""
    tn = min(max(tn_req, 128), max(_round_up(n, 128), 128))
    # 2 branches x 2 pipeline buffers; minor dim may be lane-padded to 128.
    per_row_bytes = 2 * 2 * max(d, 128) * itemsize
    budget = 24 * 1024 * 1024  # comfortable on v5e/v6e/v7x scoped VMEM
    max_tn = max(128, (budget // per_row_bytes) // 128 * 128)
    return min(tn, max_tn)


def dual_channel_attention(content_features, social_features, params, *, tn=2048):
    """params: w1c [D,H], b1c [1,H], w2c [H,1], b2c [1,1] plus social twins ('s')."""
    N, D = content_features.shape
    H = params["w1c"].shape[1]
    assert params["w1c"].shape == (D, H)
    assert social_features.shape == (N, D)

    # One-time (tiny) weight re-layout to [out, in] / column-vector biases.
    w1c_t, w1s_t = params["w1c"].T, params["w1s"].T      # [H, D]
    b1c_t, b1s_t = params["b1c"].T, params["b1s"].T      # [H, 1]
    w2c_t, w2s_t = params["w2c"].T, params["w2s"].T      # [1, H]
    b2c, b2s = params["b2c"], params["b2s"]              # [1, 1]

    itemsize = jnp.dtype(content_features.dtype).itemsize
    tile_n = _pick_tile(N, D, itemsize, tn)
    grid = (pl.cdiv(N, tile_n),)

    def full(shape):
        return pl.BlockSpec(shape, lambda i: (0,) * len(shape))

    out_t = pl.pallas_call(
        _dual_attn_kernel,
        out_shape=jax.ShapeDtypeStruct((2, N), jnp.float32),
        grid=grid,
        in_specs=[
            pl.BlockSpec((tile_n, D), lambda i: (i, 0)),   # content tile (streamed)
            pl.BlockSpec((tile_n, D), lambda i: (i, 0)),   # social tile (streamed)
            full((H, D)), full((H, D)),                    # W1 (resident)
            full((H, 1)), full((H, 1)),                    # b1
            full((1, H)), full((1, H)),                    # W2
            full((1, 1)), full((1, 1)),                    # b2
        ],
        out_specs=pl.BlockSpec((2, tile_n), lambda i: (0, i)),  # lane-dense output
        compiler_params=pltpu.CompilerParams(
            dimension_semantics=("parallel",),             # megacore-shardable (v7x)
            vmem_limit_bytes=32 * 1024 * 1024),
    )(content_features, social_features,
      w1c_t, w1s_t, b1c_t, b1s_t, w2c_t, w2s_t, b2c, b2s)

    return out_t.T                                          # [N, 2]


def init_params(key, dim):
    """Deterministic init matching nn.Linear shapes (weights stored as [in, out])."""
    h = dim // 2
    ks = jax.random.split(key, 8)
    s1 = 1.0 / jnp.sqrt(dim)
    s2 = 1.0 / jnp.sqrt(h)
    return {
        "w1c": jax.random.uniform(ks[0], (dim, h), jnp.float32, -s1, s1),
        "b1c": jax.random.uniform(ks[1], (1, h), jnp.float32, -s1, s1),
        "w2c": jax.random.uniform(ks[2], (h, 1), jnp.float32, -s2, s2),
        "b2c": jax.random.uniform(ks[3], (1, 1), jnp.float32, -s2, s2),
        "w1s": jax.random.uniform(ks[4], (dim, h), jnp.float32, -s1, s1),
        "b1s": jax.random.uniform(ks[5], (1, h), jnp.float32, -s1, s1),
        "w2s": jax.random.uniform(ks[6], (h, 1), jnp.float32, -s2, s2),
        "b2s": jax.random.uniform(ks[7], (1, 1), jnp.float32, -s2, s2),
    }


def reference(content_features, social_features, p):
    """Pure-JAX reference reproducing the PyTorch forward (f32, highest precision)."""
    hp = jax.lax.Precision.HIGHEST

    def mlp(x, w1, b1, w2, b2):
        h = jnp.maximum(jnp.dot(x, w1, precision=hp) + b1, 0.0)
        return jax.nn.sigmoid(jnp.dot(h, w2, precision=hp) + b2)

    c = mlp(content_features, p["w1c"], p["b1c"], p["w2c"], p["b2c"])
    s = mlp(social_features, p["w1s"], p["b1s"], p["w2s"], p["b2s"])
    return jax.nn.softmax(jnp.concatenate([c, s], axis=1), axis=1)


if __name__ == "__main__":
    key = jax.random.PRNGKey(0)
    k_cf, k_sf, k_p, k_cf2, k_sf2, k_cf3, k_sf3 = jax.random.split(key, 7)

    DIM = 32
    params = init_params(k_p, DIM)

    # Case 1: tiny N (single partial tile), default tile size.
    N1 = 8
    cf1 = jax.random.normal(k_cf, (N1, DIM), jnp.float32)
    sf1 = jax.random.normal(k_sf, (N1, DIM), jnp.float32)
    out1 = jax.block_until_ready(dual_channel_attention(cf1, sf1, params))
    ref1 = reference(cf1, sf1, params)
    assert out1.shape == (N1, 2)
    assert jnp.allclose(out1, ref1, atol=5e-3, rtol=0), float(jnp.abs(out1 - ref1).max())

    # Case 2: N not a tile multiple, small explicit tile -> multi-step pipelined grid
    # with a partial last block (no jnp.pad anywhere).
    N2 = 300
    cf2 = jax.random.normal(k_cf2, (N2, DIM), jnp.float32)
    sf2 = jax.random.normal(k_sf2, (N2, DIM), jnp.float32)
    out2 = jax.block_until_ready(dual_channel_attention(cf2, sf2, params, tn=128))
    ref2 = reference(cf2, sf2, params)
    assert out2.shape == (N2, 2)
    assert jnp.allclose(out2, ref2, atol=5e-3, rtol=0), float(jnp.abs(out2 - ref2).max())

    # Case 3: larger N with the default (big) tile -> 2 grid steps, partial tail.
    N3 = 2500
    cf3 = jax.random.normal(k_cf3, (N3, DIM), jnp.float32)
    sf3 = jax.random.normal(k_sf3, (N3, DIM), jnp.float32)
    out3 = jax.block_until_ready(dual_channel_attention(cf3, sf3, params))
    ref3 = reference(cf3, sf3, params)
    assert out3.shape == (N3, 2)
    assert jnp.allclose(out3, ref3, atol=5e-3, rtol=0), float(jnp.abs(out3 - ref3).max())

    print("KERNEL_OK")
</pallas_src>

<mosaic_0001>
module attributes {stable_mosaic.version = 11 : i64} {
  func.func @_dual_attn_kernel(%arg0: i32, %arg1: memref<128x32xf32, #tpu.memory_space<vmem>>, %arg2: memref<128x32xf32, #tpu.memory_space<vmem>>, %arg3: memref<16x32xf32, #tpu.memory_space<vmem>>, %arg4: memref<16x32xf32, #tpu.memory_space<vmem>>, %arg5: memref<16x1xf32, #tpu.memory_space<vmem>>, %arg6: memref<16x1xf32, #tpu.memory_space<vmem>>, %arg7: memref<1x16xf32, #tpu.memory_space<vmem>>, %arg8: memref<1x16xf32, #tpu.memory_space<vmem>>, %arg9: memref<1x1xf32, #tpu.memory_space<vmem>>, %arg10: memref<1x1xf32, #tpu.memory_space<vmem>>, %arg11: memref<2x128xf32, #tpu.memory_space<vmem>>) attributes {dimension_semantics = [#tpu.dimension_semantics<parallel>], iteration_bounds = array<i64: 1>, scalar_prefetch = 0 : i64, scratch_operands = 0 : i64, tpu.core_type = #tpu.core_type<tc>, window_params = [{transform_indices = @transform_0, window_bounds = array<i64: 128, 32>}, {transform_indices = @transform_1, window_bounds = array<i64: 128, 32>}, {pipeline_mode = #tpu.pipeline_mode<synchronous>, transform_indices = @transform_2, window_bounds = array<i64: 16, 32>}, {pipeline_mode = #tpu.pipeline_mode<synchronous>, transform_indices = @transform_3, window_bounds = array<i64: 16, 32>}, {pipeline_mode = #tpu.pipeline_mode<synchronous>, transform_indices = @transform_4, window_bounds = array<i64: 16, 1>}, {pipeline_mode = #tpu.pipeline_mode<synchronous>, transform_indices = @transform_5, window_bounds = array<i64: 16, 1>}, {pipeline_mode = #tpu.pipeline_mode<synchronous>, transform_indices = @transform_6, window_bounds = array<i64: 1, 16>}, {pipeline_mode = #tpu.pipeline_mode<synchronous>, transform_indices = @transform_7, window_bounds = array<i64: 1, 16>}, {pipeline_mode = #tpu.pipeline_mode<synchronous>, transform_indices = @transform_8, window_bounds = array<i64: 1, 1>}, {pipeline_mode = #tpu.pipeline_mode<synchronous>, transform_indices = @transform_9, window_bounds = array<i64: 1, 1>}, {transform_indices = @transform_10, window_bounds = array<i64: 2, 128>}]} {
    %c0 = arith.constant 0 : index
    %c0_0 = arith.constant 0 : index
    %0 = vector.load %arg3[%c0, %c0_0] : memref<16x32xf32, #tpu.memory_space<vmem>>, vector<16x32xf32>
    %c0_1 = arith.constant 0 : index
    %c0_2 = arith.constant 0 : index
    %1 = vector.load %arg5[%c0_1, %c0_2] : memref<16x1xf32, #tpu.memory_space<vmem>>, vector<16x1xf32>
    %c0_3 = arith.constant 0 : index
    %c0_4 = arith.constant 0 : index
    %2 = vector.load %arg7[%c0_3, %c0_4] : memref<1x16xf32, #tpu.memory_space<vmem>>, vector<1x16xf32>
    %c0_5 = arith.constant 0 : index
    %c0_6 = arith.constant 0 : index
    %3 = vector.load %arg9[%c0_5, %c0_6] : memref<1x1xf32, #tpu.memory_space<vmem>>, vector<1x1xf32>
    %c0_7 = arith.constant 0 : index
    %c0_8 = arith.constant 0 : index
    %4 = vector.load %arg1[%c0_7, %c0_8] : memref<128x32xf32, #tpu.memory_space<vmem>>, vector<128x32xf32>
    %cst = arith.constant dense<0.000000e+00> : vector<16x128xf32>
    %5 = tpu.matmul %0, %4, %cst {dimension_numbers = #tpu.dot_dimension_numbers<[1], [1], [0], [0], [0, 0, 1, 0], [], []>} : vector<16x32xf32>, vector<128x32xf32>, vector<16x128xf32> -> vector<16x128xf32>
    %6 = vector.broadcast %1 : vector<16x1xf32> to vector<16x128xf32>
    %7 = arith.addf %5, %6 : vector<16x128xf32>
    %cst_9 = arith.constant 0.000000e+00 : f32
    %8 = vector.broadcast %cst_9 : f32 to vector<16x128xf32>
    %9 = arith.maximumf %7, %8 : vector<16x128xf32>
    %cst_10 = arith.constant dense<0.000000e+00> : vector<1x128xf32>
    %10 = tpu.matmul %2, %9, %cst_10 {dimension_numbers = #tpu.dot_dimension_numbers<[1], [0], [0], [1], [0, 0, 1, 1], [], []>} : vector<1x16xf32>, vector<16x128xf32>, vector<1x128xf32> -> vector<1x128xf32>
    %11 = vector.broadcast %3 : vector<1x1xf32> to vector<1x128xf32>
    %12 = arith.addf %10, %11 : vector<1x128xf32>
    %c0_11 = arith.constant 0 : index
    %c0_12 = arith.constant 0 : index
    %13 = vector.load %arg4[%c0_11, %c0_12] : memref<16x32xf32, #tpu.memory_space<vmem>>, vector<16x32xf32>
    %c0_13 = arith.constant 0 : index
    %c0_14 = arith.constant 0 : index
    %14 = vector.load %arg6[%c0_13, %c0_14] : memref<16x1xf32, #tpu.memory_space<vmem>>, vector<16x1xf32>
    %c0_15 = arith.constant 0 : index
    %c0_16 = arith.constant 0 : index
    %15 = vector.load %arg8[%c0_15, %c0_16] : memref<1x16xf32, #tpu.memory_space<vmem>>, vector<1x16xf32>
    %c0_17 = arith.constant 0 : index
    %c0_18 = arith.constant 0 : index
    %16 = vector.load %arg10[%c0_17, %c0_18] : memref<1x1xf32, #tpu.memory_space<vmem>>, vector<1x1xf32>
    %c0_19 = arith.constant 0 : index
    %c0_20 = arith.constant 0 : index
    %17 = vector.load %arg2[%c0_19, %c0_20] : memref<128x32xf32, #tpu.memory_space<vmem>>, vector<128x32xf32>
    %cst_21 = arith.constant dense<0.000000e+00> : vector<16x128xf32>
    %18 = tpu.matmul %13, %17, %cst_21 {dimension_numbers = #tpu.dot_dimension_numbers<[1], [1], [0], [0], [0, 0, 1, 0], [], []>} : vector<16x32xf32>, vector<128x32xf32>, vector<16x128xf32> -> vector<16x128xf32>
    %19 = vector.broadcast %14 : vector<16x1xf32> to vector<16x128xf32>
    %20 = arith.addf %18, %19 : vector<16x128xf32>
    %cst_22 = arith.constant 0.000000e+00 : f32
    %21 = vector.broadcast %cst_22 : f32 to vector<16x128xf32>
    %22 = arith.maximumf %20, %21 : vector<16x128xf32>
    %cst_23 = arith.constant dense<0.000000e+00> : vector<1x128xf32>
    %23 = tpu.matmul %15, %22, %cst_23 {dimension_numbers = #tpu.dot_dimension_numbers<[1], [0], [0], [1], [0, 0, 1, 1], [], []>} : vector<1x16xf32>, vector<16x128xf32>, vector<1x128xf32> -> vector<1x128xf32>
    %24 = vector.broadcast %16 : vector<1x1xf32> to vector<1x128xf32>
    %25 = arith.addf %23, %24 : vector<1x128xf32>
    %cst_24 = arith.constant 5.000000e-01 : f32
    %26 = vector.broadcast %cst_24 : f32 to vector<1x128xf32>
    %27 = arith.mulf %26, %12 : vector<1x128xf32>
    %28 = math.tanh %27 : vector<1x128xf32>
    %cst_25 = arith.constant 5.000000e-01 : f32
    %29 = vector.broadcast %cst_25 : f32 to vector<1x128xf32>
    %30 = arith.mulf %29, %28 : vector<1x128xf32>
    %cst_26 = arith.constant 5.000000e-01 : f32
    %31 = vector.broadcast %cst_26 : f32 to vector<1x128xf32>
    %32 = arith.addf %30, %31 : vector<1x128xf32>
    %cst_27 = arith.constant 5.000000e-01 : f32
    %33 = vector.broadcast %cst_27 : f32 to vector<1x128xf32>
    %34 = arith.mulf %33, %25 : vector<1x128xf32>
    %35 = math.tanh %34 : vector<1x128xf32>
    %cst_28 = arith.constant 5.000000e-01 : f32
    %36 = vector.broadcast %cst_28 : f32 to vector<1x128xf32>
    %37 = arith.mulf %36, %35 : vector<1x128xf32>
    %cst_29 = arith.constant 5.000000e-01 : f32
    %38 = vector.broadcast %cst_29 : f32 to vector<1x128xf32>
    %39 = arith.addf %37, %38 : vector<1x128xf32>
    %40 = arith.subf %32, %39 : vector<1x128xf32>
    %cst_30 = arith.constant 5.000000e-01 : f32
    %41 = vector.broadcast %cst_30 : f32 to vector<1x128xf32>
    %42 = arith.mulf %41, %40 : vector<1x128xf32>
    %43 = math.tanh %42 : vector<1x128xf32>
    %cst_31 = arith.constant 5.000000e-01 : f32
    %44 = vector.broadcast %cst_31 : f32 to vector<1x128xf32>
    %45 = arith.mulf %44, %43 : vector<1x128xf32>
    %cst_32 = arith.constant 5.000000e-01 : f32
    %46 = vector.broadcast %cst_32 : f32 to vector<1x128xf32>
    %47 = arith.addf %45, %46 : vector<1x128xf32>
    %c0_33 = arith.constant 0 : index
    %c0_34 = arith.constant 0 : index
    %48 = vector.load %arg11[%c0_33, %c0_34] : memref<2x128xf32, #tpu.memory_space<vmem>>, vector<1x128xf32>
    tpu.vector_store %arg11[%c0_33, %c0_34], %47 {strides = array<i32>} : memref<2x128xf32, #tpu.memory_space<vmem>>, vector<1x128xf32>,
    %cst_35 = arith.constant 1.000000e+00 : f32
    %49 = vector.broadcast %cst_35 : f32 to vector<1x128xf32>
    %50 = arith.subf %49, %47 : vector<1x128xf32>
    %c1 = arith.constant 1 : index
    %c0_36 = arith.constant 0 : index
    %51 = vector.load %arg11[%c1, %c0_36] : memref<2x128xf32, #tpu.memory_space<vmem>>, vector<1x128xf32>
    tpu.vector_store %arg11[%c1, %c0_36], %50 {strides = array<i32>} : memref<2x128xf32, #tpu.memory_space<vmem>>, vector<1x128xf32>,
    return
  }
  func.func @transform_0(%arg0: i32) -> (i32, i32) {
    %c0_i32 = arith.constant 0 : i32
    %c0_i32_0 = arith.constant 0 : i32
    return %arg0, %c0_i32 : i32, i32
  }
  func.func @transform_1(%arg0: i32) -> (i32, i32) {
    %c0_i32 = arith.constant 0 : i32
    %c0_i32_0 = arith.constant 0 : i32
    return %arg0, %c0_i32 : i32, i32
  }
  func.func @transform_2(%arg0: i32) -> (i32, i32) {
    %c0_i32 = arith.constant 0 : i32
    %c0_i32_0 = arith.constant 0 : i32
    %c0_i32_1 = arith.constant 0 : i32
    return %c0_i32, %c0_i32_0 : i32, i32
  }
  func.func @transform_3(%arg0: i32) -> (i32, i32) {
    %c0_i32 = arith.constant 0 : i32
    %c0_i32_0 = arith.constant 0 : i32
    %c0_i32_1 = arith.constant 0 : i32
    return %c0_i32, %c0_i32_0 : i32, i32
  }
  func.func @transform_4(%arg0: i32) -> (i32, i32) {
    %c0_i32 = arith.constant 0 : i32
    %c0_i32_0 = arith.constant 0 : i32
    %c0_i32_1 = arith.constant 0 : i32
    return %c0_i32, %c0_i32_0 : i32, i32
  }
  func.func @transform_5(%arg0: i32) -> (i32, i32) {
    %c0_i32 = arith.constant 0 : i32
    %c0_i32_0 = arith.constant 0 : i32
    %c0_i32_1 = arith.constant 0 : i32
    return %c0_i32, %c0_i32_0 : i32, i32
  }
  func.func @transform_6(%arg0: i32) -> (i32, i32) {
    %c0_i32 = arith.constant 0 : i32
    %c0_i32_0 = arith.constant 0 : i32
    %c0_i32_1 = arith.constant 0 : i32
    return %c0_i32, %c0_i32_0 : i32, i32
  }
  func.func @transform_7(%arg0: i32) -> (i32, i32) {
    %c0_i32 = arith.constant 0 : i32
    %c0_i32_0 = arith.constant 0 : i32
    %c0_i32_1 = arith.constant 0 : i32
    return %c0_i32, %c0_i32_0 : i32, i32
  }
  func.func @transform_8(%arg0: i32) -> (i32, i32) {
    %c0_i32 = arith.constant 0 : i32
    %c0_i32_0 = arith.constant 0 : i32
    %c0_i32_1 = arith.constant 0 : i32
    return %c0_i32, %c0_i32_0 : i32, i32
  }
  func.func @transform_9(%arg0: i32) -> (i32, i32) {
    %c0_i32 = arith.constant 0 : i32
    %c0_i32_0 = arith.constant 0 : i32
    %c0_i32_1 = arith.constant 0 : i32
    return %c0_i32, %c0_i32_0 : i32, i32
  }
  func.func @transform_10(%arg0: i32) -> (i32, i32) {
    %c0_i32 = arith.constant 0 : i32
    %c0_i32_0 = arith.constant 0 : i32
    return %c0_i32, %arg0 : i32, i32
  }
}

</mosaic_0001>

<llo_original>
// kernel: tpu_custom_call.1
$region0: #{tpu_custom_call.1}
  #allocation0 [shape = 'u32[]', space=smem, size = 0x4, offset = 0x4, fixed_abs, tag = 'smem constant byte address 0x4 - core index']
  #allocation1 [shape = 'u32[144,128]{1,0:T(1,128)}', space=vmem, size = 0x12000, scoped, tag = 'internal scratch']
  #allocation2 [shape = 'f32[1,1]{1,0:T(1,128)S(1)}', space=vmem, size = 0x200, scoped, tag = 'scoped memory for tpu_custom_call.1']
  #allocation3 [shape = 'f32[1,1]{1,0:T(1,128)S(1)}', space=vmem, size = 0x200, scoped, tag = 'scoped memory for tpu_custom_call.1']
  %s0 = inlined_call_operand.vmem [shape: f32[8,32], index: 0, kind: input, shape index: {}]
  %s1 = inlined_call_operand.hbm [shape: f32[8,32], index: 1, kind: input, shape index: {}]
  %s2 = inlined_call_operand.vmem [shape: f32[16,32], index: 2, kind: input, shape index: {}]
  %s3 = inlined_call_operand.vmem [shape: f32[16,32], index: 3, kind: input, shape index: {}]
  %s4 = inlined_call_operand.vmem [shape: f32[16,1], index: 4, kind: input, shape index: {}]
  %s5 = inlined_call_operand.vmem [shape: f32[16,1], index: 5, kind: input, shape index: {}]
  %s6 = inlined_call_operand.vmem [shape: f32[1,16], index: 6, kind: input, shape index: {}]
  %s7 = inlined_call_operand.vmem [shape: f32[1,16], index: 7, kind: input, shape index: {}]
  %s8 = inlined_call_operand.<no memory space> [shape: f32[1,1], index: 8, kind: input, shape index: {}]
  %s9 = inlined_call_operand.<no memory space> [shape: f32[1,1], index: 9, kind: input, shape index: {}]
  %s10 = inlined_call_operand.hbm [shape: f32[2,8], index: 10, kind: output, shape index: {}]
  %s11 = sld [smem:[#allocation0]]
  $region54: #{tpu_custom_call.1} parent=0
    _
  %s13 = ssub.s32 1, %s11
  %s14 = scalar_select 0, %s13, %s11
  %v15 = vstv %s8
  %16 = vst [vmem:[#allocation2] sm:$0x1] %v15
  %v17 = vstv %s9
  %18 = vst [vmem:[#allocation3] sm:$0x1] %v17
  $region1: #{tpu_custom_call.1} parent=0
    #allocation4 [shape = 'u8[65536]{0}', space=vmem, size = 0x10000, scoped, tag = 'input window, operand 1, single buffered']
    #allocation5 [shape = 's32[1]{0}', space=sflag, size = 0x4, scoped, tag = 'scoped memory for tpu_custom_call.1']
    #allocation6 [shape = 's32[1]{0}', space=sflag, size = 0x4, scoped, tag = 'scoped memory for tpu_custom_call.1']
    #allocation7 [shape = 'u8[1024]{0}', space=vmem, size = 0x400, scoped, tag = 'output window, operand 0, single buffered']
    %19 = vsyncpa [#allocation5], 0
    %20 = vsyncpa [#allocation6], 0
    // Predicated region
    $region2: #{tpu_custom_call.1} parent=1 // pred_check
      _
    $region3: #{tpu_custom_call.1} parent=1 // pred_check_branch
      %22 = sbr.rel (0) target = $region5
    $region4: #{tpu_custom_call.1} parent=1 // pred_region
      _
    $region5: #{tpu_custom_call.1} parent=1 // pred_fallthru
      _
    // Predicated region
    $region6: #{tpu_custom_call.1} parent=1 // pred_check
      _
    $region7: #{tpu_custom_call.1} parent=1 // pred_check_branch
      %24 = sbr.rel (0) target = $region9
    $region8: #{tpu_custom_call.1} parent=1 // pred_region
      %s26 = ssub.s32 2048, 128
      %27 = vsyncadd [#allocation5], %s26
      %s28 = sshll.u32 [#allocation4], 4
      %s29 = int_to_ptr.vmem [resolvable:$true] %s28
      %34 = dma.hbm_to_vmem [thread:$0]  %s1, 128, %s29, [#allocation5], 128, 128, 8
    $region9: #{tpu_custom_call.1} parent=1 // pred_fallthru
      _
    // Predicated region
    $region10: #{tpu_custom_call.1} parent=1 // pred_check
      _
    $region11: #{tpu_custom_call.1} parent=1 // pred_check_branch
      %36 = sbr.rel (0) target = $region13
    $region12: #{tpu_custom_call.1} parent=1 // pred_region
      _
    $region13: #{tpu_custom_call.1} parent=1 // pred_fallthru
      _
    // Predicated region
    $region14: #{tpu_custom_call.1} parent=1 // pred_check
      _
    $region15: #{tpu_custom_call.1} parent=1 // pred_check_branch
      %38 = sbr.rel (0) target = $region17
    $region16: #{tpu_custom_call.1} parent=1 // pred_region
      _
    $region17: #{tpu_custom_call.1} parent=1 // pred_fallthru
      _
    // Predicated region
    $region18: #{tpu_custom_call.1} parent=1 // pred_check
      _
    $region19: #{tpu_custom_call.1} parent=1 // pred_check_branch
      %40 = sbr.rel (0) target = $region21
    $region20: #{tpu_custom_call.1} parent=1 // pred_region
      _
    $region21: #{tpu_custom_call.1} parent=1 // pred_fallthru
      _
    // Predicated region
    $region22: #{tpu_custom_call.1} parent=1 // pred_check
      _
    $region23: #{tpu_custom_call.1} parent=1 // pred_check_branch
      %42 = sbr.rel (0) target = $region25
    $region24: #{tpu_custom_call.1} parent=1 // pred_region
      _
    $region25: #{tpu_custom_call.1} parent=1 // pred_fallthru
      _
    // Predicated region
    $region26: #{tpu_custom_call.1} parent=1 // pred_check
      _
    $region27: #{tpu_custom_call.1} parent=1 // pred_check_branch
      %44 = sbr.rel (0) target = $region29
    $region28: #{tpu_custom_call.1} parent=1 // pred_region
      _
    $region29: #{tpu_custom_call.1} parent=1 // pred_fallthru
      _
    // Predicated region
    $region30: #{tpu_custom_call.1} parent=1 // pred_check
      _
    $region31: #{tpu_custom_call.1} parent=1 // pred_check_branch
      %46 = sbr.rel (0) target = $region33
    $region32: #{tpu_custom_call.1} parent=1 // pred_region
      _
    $region33: #{tpu_custom_call.1} parent=1 // pred_fallthru
      _
    // Predicated region
    $region34: #{tpu_custom_call.1} parent=1 // pred_check
      _
    $region35: #{tpu_custom_call.1} parent=1 // pred_check_branch
      %48 = sbr.rel (0) target = $region37
    $region36: #{tpu_custom_call.1} parent=1 // pred_region
      _
    $region37: #{tpu_custom_call.1} parent=1 // pred_fallthru
      _
    // Predicated region
    $region38: #{tpu_custom_call.1} parent=1 // pred_check
      _
    $region39: #{tpu_custom_call.1} parent=1 // pred_check_branch
      %50 = sbr.rel (0) target = $region41
    $region40: #{tpu_custom_call.1} parent=1 // pred_region
      _
    $region41: #{tpu_custom_call.1} parent=1 // pred_fallthru
      _
    // Predicated region
    $region42: #{tpu_custom_call.1} parent=1 // pred_check
      _
    $region43: #{tpu_custom_call.1} parent=1 // pred_check_branch
      %52 = sbr.rel (0) target = $region45
    $region44: #{tpu_custom_call.1} parent=1 // pred_region
      %53 = dma.done [#allocation5], 2048
    $region45: #{tpu_custom_call.1} parent=1 // pred_fallthru
      _
    %v54 = vld [vmem:[%s2] sm:$0xff]
    %v55 = vld [vmem:[%s2 + $0x8] sm:$0xff]
    %v56 = vld [vmem:[%s4] sm:$0xff]
    %v57 = vld [vmem:[%s4 + $0x8] sm:$0xff]
    %v58 = vld [vmem:[%s6] sm:$0x1]
    %v59 = vld [vmem:[#allocation2] sm:$0x1]
    %v60 = vld [vmem:[%s0] sm:$0xff]
    %v61 = vld [vmem:[%s0 + $0x8] sm:$0xff]
    %v62 = vld [vmem:[%s0 + $0x10] sm:$0xff]
    %v63 = vld [vmem:[%s0 + $0x18] sm:$0xff]
    %v64 = vld [vmem:[%s0 + $0x20] sm:$0xff]
    %v65 = vld [vmem:[%s0 + $0x28] sm:$0xff]
    %v66 = vld [vmem:[%s0 + $0x30] sm:$0xff]
    %v67 = vld [vmem:[%s0 + $0x38] sm:$0xff]
    %v68 = vld [vmem:[%s0 + $0x40] sm:$0xff]
    %v69 = vld [vmem:[%s0 + $0x48] sm:$0xff]
    %v70 = vld [vmem:[%s0 + $0x50] sm:$0xff]
    %v71 = vld [vmem:[%s0 + $0x58] sm:$0xff]
    %v72 = vld [vmem:[%s0 + $0x60] sm:$0xff]
    %v73 = vld [vmem:[%s0 + $0x68] sm:$0xff]
    %v74 = vld [vmem:[%s0 + $0x70] sm:$0xff]
    %v75 = vld [vmem:[%s0 + $0x78] sm:$0xff]
    %77 = vset.pattern.permute.xlu0 0
    %78 = vperm.xlu0 %77, %v56
    %v79 = vpop.permute.xlu0 %78
    %82 = vset.pattern.permute.xlu0 0
    %83 = vperm.xlu0 %82, %v57
    %v84 = vpop.permute.xlu0 %83
    %vm86 = vcmask 261120
    %v88 = vsel %vm86, %v54, 0
    %v91 = vsel %vm86, %v55, 0
    %v94 = vsel %vm86, %v60, 0
    %v97 = vsel %vm86, %v61, 0
    %v100 = vsel %vm86, %v62, 0
    %v103 = vsel %vm86, %v63, 0
    %v106 = vsel %vm86, %v64, 0
    %v109 = vsel %vm86, %v65, 0
    %v112 = vsel %vm86, %v66, 0
    %v115 = vsel %vm86, %v67, 0
    %v118 = vsel %vm86, %v68, 0
    %v121 = vsel %vm86, %v69, 0
    %v124 = vsel %vm86, %v70, 0
    %v127 = vsel %vm86, %v71, 0
    %v130 = vsel %vm86, %v72, 0
    %v133 = vsel %vm86, %v73, 0
    %v136 = vsel %vm86, %v74, 0
    %v139 = vsel %vm86, %v75, 0
    %141 = vmatprep.subr.mxu0 0.0
    %142 = vmatpush1.xpose.msra.mxu0 %v94
    %143 = vmatprep.subr.mxu0 0.0
    %144 = vmatpush1.xpose.msra.mxu0 %v97
    %145 = vmatprep.subr.mxu0 0.0
    %146 = vmatpush1.xpose.msra.mxu0 %v100
    %147 = vmatprep.subr.mxu0 0.0
    %148 = vmatpush1.xpose.msra.mxu0 %v103
    %149 = vmatprep.subr.mxu0 0.0
    %150 = vmatpush1.xpose.msra.mxu0 %v106
    %151 = vmatprep.subr.mxu0 0.0
    %152 = vmatpush1.xpose.msra.mxu0 %v109
    %153 = vmatprep.subr.mxu0 0.0
    %154 = vmatpush1.xpose.msra.mxu0 %v112
    %155 = vmatprep.subr.mxu0 0.0
    %156 = vmatpush1.xpose.msra.mxu0 %v115
    %157 = vmatprep.subr.mxu0 0.0
    %158 = vmatpush1.xpose.msra.mxu0 %v118
    %159 = vmatprep.subr.mxu0 0.0
    %160 = vmatpush1.xpose.msra.mxu0 %v121
    %161 = vmatprep.subr.mxu0 0.0
    %162 = vmatpush1.xpose.msra.mxu0 %v124
    %163 = vmatprep.subr.mxu0 0.0
    %164 = vmatpush1.xpose.msra.mxu0 %v127
    %165 = vmatprep.subr.mxu0 0.0
    %166 = vmatpush1.xpose.msra.mxu0 %v130
    %167 = vmatprep.subr.mxu0 0.0
    %168 = vmatpush1.xpose.msra.mxu0 %v133
    %169 = vmatprep.subr.mxu0 0.0
    %170 = vmatpush1.xpose.msra.mxu0 %v136
    %171 = vmatprep.subr.mxu0 0.0
    %172 = vmatpush1.xpose.msra.mxu0 %v139
    %173 = vmatprep.subr.mxu0 0.0
    %174 = vmatpush1.xpose.msra.mxu0 0.0
    %175 = vmatprep.subr.mxu0 0.0
    %176 = vmatpush1.xpose.msra.mxu0 0.0
    %177 = vmatprep.subr.mxu0 0.0
    %178 = vmatpush1.xpose.msra.mxu0 0.0
    %179 = vmatprep.subr.mxu0 0.0
    %180 = vmatpush1.xpose.msra.mxu0 0.0
    %181 = vmatprep.subr.mxu0 0.0
    %182 = vmatpush1.xpose.msra.mxu0 0.0
    %183 = vmatprep.subr.mxu0 0.0
    %184 = vmatpush1.xpose.msra.mxu0 0.0
    %185 = vmatprep.subr.mxu0 0.0
    %186 = vmatpush1.xpose.msra.mxu0 0.0
    %187 = vmatprep.subr.mxu0 0.0
    %188 = vmatpush1.xpose.msra.mxu0 0.0
    %189 = vmatprep.subr.mxu0 0.0
    %190 = vmatpush1.xpose.msra.mxu0 0.0
    %191 = vmatprep.subr.mxu0 0.0
    %192 = vmatpush1.xpose.msra.mxu0 0.0
    %193 = vmatprep.subr.mxu0 0.0
    %194 = vmatpush1.xpose.msra.mxu0 0.0
    %195 = vmatprep.subr.mxu0 0.0
    %196 = vmatpush1.xpose.msra.mxu0 0.0
    %197 = vmatprep.subr.mxu0 0.0
    %198 = vmatpush1.xpose.msra.mxu0 0.0
    %199 = vmatprep.subr.mxu0 0.0
    %200 = vmatpush1.xpose.msra.mxu0 0.0
    %201 = vmatprep.subr.mxu0 0.0
    %202 = vmatpush1.xpose.msra.mxu0 0.0
    %203 = vmatprep.subr.mxu0 0.0
    %204 = vmatpush1.xpose.msra.mxu0 0.0
    %205 = vmatprep.mubr.f32.mxu0 0.0
    %206 = vmatmul.mubr.f32.gmra.mrb[0].mxu0 %v88
    %v207 = vpop.f32.mrb[0].mxu0
    %v208 = vadd.f32 %v79, %v207
    %v209 = vpop.f32.mrb[0].mxu0
    %210 = vmatprep.mubr.f32.mxu0 0.0
    %211 = vmatmul.mubr.f32.gmra.mrb[0].mxu0 %v91
    %v212 = vpop.f32.mrb[0].mxu0
    %v213 = vadd.f32 %v84, %v212
    %v214 = vpop.f32.mrb[0].mxu0
    %215 = vdwg.mxu0
    %v216 = vmax.f32 %v208, 0.0
    %v217 = vmax.f32 %v213, 0.0
    %219 = vset.pattern.permute.xlu0 0
    %220 = vperm.xlu0 %219, %v59
    %v221 = vpop.permute.xlu0 %220
    %v223 = vlaneseq
    %v224 = vshrl.u32 %v223, 7
    %v225 = vsub.s32 0, %v224
    %v226 = vrot.slane %v221, %v225
    %vm227 = vcmask 130048
    %v229 = vsel %vm227, %v58, 0
    %231 = vmatprep.subr.mxu0 0.0
    %232 = vmatpush1.msra.mxu0 %v216
    %233 = vmatprep.subr.mxu0 0.0
    %234 = vmatpush1.msra.mxu0 %v217
    %235 = vmatprep.subr.mxu0 0.0
    %236 = vmatpush1.msra.mxu0 0.0
    %237 = vmatprep.subr.mxu0 0.0
    %238 = vmatpush1.msra.mxu0 0.0
    %239 = vmatprep.subr.mxu0 0.0
    %240 = vmatpush1.msra.mxu0 0.0
    %241 = vmatprep.subr.mxu0 0.0
    %242 = vmatpush1.msra.mxu0 0.0
    %243 = vmatprep.subr.mxu0 0.0
    %244 = vmatpush1.msra.mxu0 0.0
    %245 = vmatprep.subr.mxu0 0.0
    %246 = vmatpush1.msra.mxu0 0.0
    %247 = vmatprep.subr.mxu0 0.0
    %248 = vmatpush1.msra.mxu0 0.0
    %249 = vmatprep.subr.mxu0 0.0
    %250 = vmatpush1.msra.mxu0 0.0
    %251 = vmatprep.subr.mxu0 0.0
    %252 = vmatpush1.msra.mxu0 0.0
    %253 = vmatprep.subr.mxu0 0.0
    %254 = vmatpush1.msra.mxu0 0.0
    %255 = vmatprep.subr.mxu0 0.0
    %256 = vmatpush1.msra.mxu0 0.0
    %257 = vmatprep.subr.mxu0 0.0
    %258 = vmatpush1.msra.mxu0 0.0
    %259 = vmatprep.subr.mxu0 0.0
    %260 = vmatpush1.msra.mxu0 0.0
    %261 = vmatprep.subr.mxu0 0.0
    %262 = vmatpush1.msra.mxu0 0.0
    %263 = vmatprep.subr.mxu0 0.0
    %264 = vmatpush1.msra.mxu0 0.0
    %265 = vmatprep.subr.mxu0 0.0
    %266 = vmatpush1.msra.mxu0 0.0
    %267 = vmatprep.subr.mxu0 0.0
    %268 = vmatpush1.msra.mxu0 0.0
    %269 = vmatprep.subr.mxu0 0.0
    %270 = vmatpush1.msra.mxu0 0.0
    %271 = vmatprep.subr.mxu0 0.0
    %272 = vmatpush1.msra.mxu0 0.0
    %273 = vmatprep.subr.mxu0 0.0
    %274 = vmatpush1.msra.mxu0 0.0
    %275 = vmatprep.subr.mxu0 0.0
    %276 = vmatpush1.msra.mxu0 0.0
    %277 = vmatprep.subr.mxu0 0.0
    %278 = vmatpush1.msra.mxu0 0.0
    %279 = vmatprep.subr.mxu0 0.0
    %280 = vmatpush1.msra.mxu0 0.0
    %281 = vmatprep.subr.mxu0 0.0
    %282 = vmatpush1.msra.mxu0 0.0
    %283 = vmatprep.subr.mxu0 0.0
    %284 = vmatpush1.msra.mxu0 0.0
    %285 = vmatprep.subr.mxu0 0.0
    %286 = vmatpush1.msra.mxu0 0.0
    %287 = vmatprep.subr.mxu0 0.0
    %288 = vmatpush1.msra.mxu0 0.0
    %289 = vmatprep.subr.mxu0 0.0
    %290 = vmatpush1.msra.mxu0 0.0
    %291 = vmatprep.subr.mxu0 0.0
    %292 = vmatpush1.msra.mxu0 0.0
    %293 = vmatprep.subr.mxu0 0.0
    %294 = vmatpush1.msra.mxu0 0.0
    %295 = vmatprep.mubr.f32.mxu0 0.0
    %296 = vmatmul.mubr.f32.gmra.mrb[0].mxu0 %v229
    %v297 = vpop.f32.mrb[0].mxu0
    %v298 = vadd.f32 %v226, %v297
    %v299 = vpop.f32.mrb[0].mxu0
    %300 = vdwg.mxu0
    %v301 = vld [vmem:[%s3] sm:$0xff]
    %v302 = vld [vmem:[%s3 + $0x8] sm:$0xff]
    %v303 = vld [vmem:[%s5] sm:$0xff]
    %v304 = vld [vmem:[%s5 + $0x8] sm:$0xff]
    %v305 = vld [vmem:[%s7] sm:$0x1]
    %v306 = vld [vmem:[#allocation3] sm:$0x1]
    %v307 = vld [vmem:[#allocation4] sm:$0xff]
    %v308 = vld [vmem:[#allocation4 + $0x8] sm:$0xff]
    %v309 = vld [vmem:[#allocation4 + $0x10] sm:$0xff]
    %v310 = vld [vmem:[#allocation4 + $0x18] sm:$0xff]
    %v311 = vld [vmem:[#allocation4 + $0x20] sm:$0xff]
    %v312 = vld [vmem:[#allocation4 + $0x28] sm:$0xff]
    %v313 = vld [vmem:[#allocation4 + $0x30] sm:$0xff]
    %v314 = vld [vmem:[#allocation4 + $0x38] sm:$0xff]
    %v315 = vld [vmem:[#allocation4 + $0x40] sm:$0xff]
    %v316 = vld [vmem:[#allocation4 + $0x48] sm:$0xff]
    %v317 = vld [vmem:[#allocation4 + $0x50] sm:$0xff]
    %v318 = vld [vmem:[#allocation4 + $0x58] sm:$0xff]
    %v319 = vld [vmem:[#allocation4 + $0x60] sm:$0xff]
    %v320 = vld [vmem:[#allocation4 + $0x68] sm:$0xff]
    %v321 = vld [vmem:[#allocation4 + $0x70] sm:$0xff]
    %v322 = vld [vmem:[#allocation4 + $0x78] sm:$0xff]
    %324 = vset.pattern.permute.xlu0 0
    %325 = vperm.xlu0 %324, %v303
    %v326 = vpop.permute.xlu0 %325
    %329 = vset.pattern.permute.xlu0 0
    %330 = vperm.xlu0 %329, %v304
    %v331 = vpop.permute.xlu0 %330
    %v334 = vsel %vm86, %v301, 0
    %v337 = vsel %vm86, %v302, 0
    %v340 = vsel %vm86, %v307, 0
    %v343 = vsel %vm86, %v308, 0
    %v346 = vsel %vm86, %v309, 0
    %v349 = vsel %vm86, %v310, 0
    %v352 = vsel %vm86, %v311, 0
    %v355 = vsel %vm86, %v312, 0
    %v358 = vsel %vm86, %v313, 0
    %v361 = vsel %vm86, %v314, 0
    %v364 = vsel %vm86, %v315, 0
    %v367 = vsel %vm86, %v316, 0
    %v370 = vsel %vm86, %v317, 0
    %v373 = vsel %vm86, %v318, 0
    %v376 = vsel %vm86, %v319, 0
    %v379 = vsel %vm86, %v320, 0
    %v382 = vsel %vm86, %v321, 0
    %v385 = vsel %vm86, %v322, 0
    %387 = vmatprep.subr.mxu0 0.0
    %388 = vmatpush1.xpose.msra.mxu0 %v340
    %389 = vmatprep.subr.mxu0 0.0
    %390 = vmatpush1.xpose.msra.mxu0 %v343
    %391 = vmatprep.subr.mxu0 0.0
    %392 = vmatpush1.xpose.msra.mxu0 %v346
    %393 = vmatprep.subr.mxu0 0.0
    %394 = vmatpush1.xpose.msra.mxu0 %v349
    %395 = vmatprep.subr.mxu0 0.0
    %396 = vmatpush1.xpose.msra.mxu0 %v352
    %397 = vmatprep.subr.mxu0 0.0
    %398 = vmatpush1.xpose.msra.mxu0 %v355
    %399 = vmatprep.subr.mxu0 0.0
    %400 = vmatpush1.xpose.msra.mxu0 %v358
    %401 = vmatprep.subr.mxu0 0.0
    %402 = vmatpush1.xpose.msra.mxu0 %v361
    %403 = vmatprep.subr.mxu0 0.0
    %404 = vmatpush1.xpose.msra.mxu0 %v364
    %405 = vmatprep.subr.mxu0 0.0
    %406 = vmatpush1.xpose.msra.mxu0 %v367
    %407 = vmatprep.subr.mxu0 0.0
    %408 = vmatpush1.xpose.msra.mxu0 %v370
    %409 = vmatprep.subr.mxu0 0.0
    %410 = vmatpush1.xpose.msra.mxu0 %v373
    %411 = vmatprep.subr.mxu0 0.0
    %412 = vmatpush1.xpose.msra.mxu0 %v376
    %413 = vmatprep.subr.mxu0 0.0
    %414 = vmatpush1.xpose.msra.mxu0 %v379
    %415 = vmatprep.subr.mxu0 0.0
    %416 = vmatpush1.xpose.msra.mxu0 %v382
    %417 = vmatprep.subr.mxu0 0.0
    %418 = vmatpush1.xpose.msra.mxu0 %v385
    %419 = vmatprep.subr.mxu0 0.0
    %420 = vmatpush1.xpose.msra.mxu0 0.0
    %421 = vmatprep.subr.mxu0 0.0
    %422 = vmatpush1.xpose.msra.mxu0 0.0
    %423 = vmatprep.subr.mxu0 0.0
    %424 = vmatpush1.xpose.msra.mxu0 0.0
    %425 = vmatprep.subr.mxu0 0.0
    %426 = vmatpush1.xpose.msra.mxu0 0.0
    %427 = vmatprep.subr.mxu0 0.0
    %428 = vmatpush1.xpose.msra.mxu0 0.0
    %429 = vmatprep.subr.mxu0 0.0
    %430 = vmatpush1.xpose.msra.mxu0 0.0
    %431 = vmatprep.subr.mxu0 0.0
    %432 = vmatpush1.xpose.msra.mxu0 0.0
    %433 = vmatprep.subr.mxu0 0.0
    %434 = vmatpush1.xpose.msra.mxu0 0.0
    %435 = vmatprep.subr.mxu0 0.0
    %436 = vmatpush1.xpose.msra.mxu0 0.0
    %437 = vmatprep.subr.mxu0 0.0
    %438 = vmatpush1.xpose.msra.mxu0 0.0
    %439 = vmatprep.subr.mxu0 0.0
    %440 = vmatpush1.xpose.msra.mxu0 0.0
    %441 = vmatprep.subr.mxu0 0.0
    %442 = vmatpush1.xpose.msra.mxu0 0.0
    %443 = vmatprep.subr.mxu0 0.0
    %444 = vmatpush1.xpose.msra.mxu0 0.0
    %445 = vmatprep.subr.mxu0 0.0
    %446 = vmatpush1.xpose.msra.mxu0 0.0
    %447 = vmatprep.subr.mxu0 0.0
    %448 = vmatpush1.xpose.msra.mxu0 0.0
    %449 = vmatprep.subr.mxu0 0.0
    %450 = vmatpush1.xpose.msra.mxu0 0.0
    %451 = vmatprep.mubr.f32.mxu0 0.0
    %452 = vmatmul.mubr.f32.gmra.mrb[0].mxu0 %v334
    %v453 = vpop.f32.mrb[0].mxu0
    %v454 = vadd.f32 %v326, %v453
    %v455 = vpop.f32.mrb[0].mxu0
    %456 = vmatprep.mubr.f32.mxu0 0.0
    %457 = vmatmul.mubr.f32.gmra.mrb[0].mxu0 %v337
    %v458 = vpop.f32.mrb[0].mxu0
    %v459 = vadd.f32 %v331, %v458
    %v460 = vpop.f32.mrb[0].mxu0
    %461 = vdwg.mxu0
    %v462 = vmax.f32 %v454, 0.0
    %v463 = vmax.f32 %v459, 0.0
    %465 = vset.pattern.permute.xlu0 0
    %466 = vperm.xlu0 %465, %v306
    %v467 = vpop.permute.xlu0 %466
    %v469 = vlaneseq
    %v470 = vshrl.u32 %v469, 7
    %v471 = vsub.s32 0, %v470
    %v472 = vrot.slane %v467, %v471
    %v474 = vsel %vm227, %v305, 0
    %476 = vmatprep.subr.mxu0 0.0
    %477 = vmatpush1.msra.mxu0 %v462
    %478 = vmatprep.subr.mxu0 0.0
    %479 = vmatpush1.msra.mxu0 %v463
    %480 = vmatprep.subr.mxu0 0.0
    %481 = vmatpush1.msra.mxu0 0.0
    %482 = vmatprep.subr.mxu0 0.0
    %483 = vmatpush1.msra.mxu0 0.0
    %484 = vmatprep.subr.mxu0 0.0
    %485 = vmatpush1.msra.mxu0 0.0
    %486 = vmatprep.subr.mxu0 0.0
    %487 = vmatpush1.msra.mxu0 0.0
    %488 = vmatprep.subr.mxu0 0.0
    %489 = vmatpush1.msra.mxu0 0.0
    %490 = vmatprep.subr.mxu0 0.0
    %491 = vmatpush1.msra.mxu0 0.0
    %492 = vmatprep.subr.mxu0 0.0
    %493 = vmatpush1.msra.mxu0 0.0
    %494 = vmatprep.subr.mxu0 0.0
    %495 = vmatpush1.msra.mxu0 0.0
    %496 = vmatprep.subr.mxu0 0.0
    %497 = vmatpush1.msra.mxu0 0.0
    %498 = vmatprep.subr.mxu0 0.0
    %499 = vmatpush1.msra.mxu0 0.0
    %500 = vmatprep.subr.mxu0 0.0
    %501 = vmatpush1.msra.mxu0 0.0
    %502 = vmatprep.subr.mxu0 0.0
    %503 = vmatpush1.msra.mxu0 0.0
    %504 = vmatprep.subr.mxu0 0.0
    %505 = vmatpush1.msra.mxu0 0.0
    %506 = vmatprep.subr.mxu0 0.0
    %507 = vmatpush1.msra.mxu0 0.0
    %508 = vmatprep.subr.mxu0 0.0
    %509 = vmatpush1.msra.mxu0 0.0
    %510 = vmatprep.subr.mxu0 0.0
    %511 = vmatpush1.msra.mxu0 0.0
    %512 = vmatprep.subr.mxu0 0.0
    %513 = vmatpush1.msra.mxu0 0.0
    %514 = vmatprep.subr.mxu0 0.0
    %515 = vmatpush1.msra.mxu0 0.0
    %516 = vmatprep.subr.mxu0 0.0
    %517 = vmatpush1.msra.mxu0 0.0
    %518 = vmatprep.subr.mxu0 0.0
    %519 = vmatpush1.msra.mxu0 0.0
    %520 = vmatprep.subr.mxu0 0.0
    %521 = vmatpush1.msra.mxu0 0.0
    %522 = vmatprep.subr.mxu0 0.0
    %523 = vmatpush1.msra.mxu0 0.0
    %524 = vmatprep.subr.mxu0 0.0
    %525 = vmatpush1.msra.mxu0 0.0
    %526 = vmatprep.subr.mxu0 0.0
    %527 = vmatpush1.msra.mxu0 0.0
    %528 = vmatprep.subr.mxu0 0.0
    %529 = vmatpush1.msra.mxu0 0.0
    %530 = vmatprep.subr.mxu0 0.0
    %531 = vmatpush1.msra.mxu0 0.0
    %532 = vmatprep.subr.mxu0 0.0
    %533 = vmatpush1.msra.mxu0 0.0
    %534 = vmatprep.subr.mxu0 0.0
    %535 = vmatpush1.msra.mxu0 0.0
    %536 = vmatprep.subr.mxu0 0.0
    %537 = vmatpush1.msra.mxu0 0.0
    %538 = vmatprep.subr.mxu0 0.0
    %539 = vmatpush1.msra.mxu0 0.0
    %540 = vmatprep.mubr.f32.mxu0 0.0
    %541 = vmatmul.mubr.f32.gmra.mrb[0].mxu0 %v474
    %v542 = vpop.f32.mrb[0].mxu0
    %v543 = vadd.f32 %v472, %v542
    %v544 = vpop.f32.mrb[0].mxu0
    %545 = vdwg.mxu0
    %v546 = vmul.f32 %v298, 0.5
    %v547 = vtanh.pop %v546
    %v548 = vmul.f32 %v547, 0.5
    %v549 = vadd.f32 %v548, 0.5
    %v550 = vmul.f32 %v543, 0.5
    %v551 = vtanh.pop %v550
    %v552 = vmul.f32 %v551, 0.5
    %v553 = vadd.f32 %v552, 0.5
    %v554 = vsub.f32 %v549, %v553
    %v555 = vmul.f32 %v554, 0.5
    %v556 = vtanh.pop %v555
    %v557 = vmul.f32 %v556, 0.5
    %v558 = vadd.f32 %v557, 0.5
    %559 = vst [vmem:[#allocation7] sm:$0x1] %v558
    %v560 = vsub.f32 1.0, %v558
    %561 = vst [vmem:[#allocation7 + $0x1] sm:$0x1] %v560
    // Predicated region
    $region46: #{tpu_custom_call.1} parent=1 // pred_check
      _
    $region47: #{tpu_custom_call.1} parent=1 // pred_check_branch
      %563 = sbr.rel (0) target = $region49
    $region48: #{tpu_custom_call.1} parent=1 // pred_region
      %s565 = ssub.s32 32, 32
      %566 = vsyncadd [#allocation6], %s565
      %s568 = sshll.u32 [#allocation7], 4
      %s569 = int_to_ptr.vmem [resolvable:$true] %s568
      %571 = dma.vmem_to_hbm [thread:$0]  %s569, 32, %s10, [#allocation6]
    $region49: #{tpu_custom_call.1} parent=1 // pred_fallthru
      _
    // Predicated region
    $region50: #{tpu_custom_call.1} parent=1 // pred_check
      _
    $region51: #{tpu_custom_call.1} parent=1 // pred_check_branch
      %573 = sbr.rel (0) target = $region53
    $region52: #{tpu_custom_call.1} parent=1 // pred_region
      %574 = dma.done [#allocation6], 32
    $region53: #{tpu_custom_call.1} parent=1 // pred_fallthru
      _
    %575 = vsyncpa [#allocation5], 1
    %576 = vsyncpa [#allocation6], 1

</llo_original>
